<compile_context>
chip_gen: v7x
topology: tpu7x:2x2x1
jax: 0.10.0
libtpu: 0.0.40
codegen_flags: <defaults>
</compile_context>

<pallas_src>
import functools

import jax
import jax.numpy as jnp
from jax.experimental import pallas as pl
from jax.experimental.pallas import tpu as pltpu

BN_EPS = 1e-5


# ---------------------------------------------------------------------------
# Kernel A: per-K-tile BatchNorm statistics of h = x @ w.
#   sum_ref[k] = sum_rows(h)                  (1, 1, units)
#   m2_ref[k]  = sum_rows((h - tile_mean)^2)  (1, 1, units)
# (Chan's parallel-variance pieces; merged in plain JAX.)
# The linear bias is omitted: it is exactly cancelled by the BN mean
# subtraction, so it never affects the normalized output.
# ---------------------------------------------------------------------------
def vfe_stats_kernel(x_ref, w_ref, sum_ref, m2_ref, *, t, k_true, padded):
    tk, _, cin = x_ref.shape
    units = w_ref.shape[1]
    rows = tk * t

    h = jnp.dot(x_ref[...].reshape(rows, cin), w_ref[...],
                preferred_element_type=jnp.float32)            # (rows, units) f32

    if padded:
        # Zero-padded voxels contribute exactly 0 to sum(h) (x rows are 0 and
        # there is no bias), but must be excluded from the centered M2.
        k = pl.program_id(0)
        vox = k * tk + jax.lax.broadcasted_iota(jnp.int32, (rows, 1), 0) // t
        valid = (vox < k_true).astype(jnp.float32)             # (rows, 1)
        n_valid = (jnp.minimum(tk, k_true - k * tk) * t).astype(jnp.float32)
        s = jnp.sum(h, axis=0, keepdims=True)                  # (1, units)
        mu = s * (1.0 / n_valid)
        d = (h - mu) * valid
    else:
        s = jnp.sum(h, axis=0, keepdims=True)
        mu = s * (1.0 / float(rows))
        d = h - mu

    m2 = jnp.sum(d * d, axis=0, keepdims=True)
    sum_ref[...] = s.reshape(1, 1, units)
    m2_ref[...] = m2.reshape(1, 1, units)


# ---------------------------------------------------------------------------
# Kernel B: fused BN (pre-folded scale/shift) + relu + per-voxel max + mask.
# ---------------------------------------------------------------------------
def vfe_apply_kernel(x_ref, mask_ref, w2_ref, scale_ref, shift_ref, out_ref, *, t):
    tk, _, cin = x_ref.shape
    u2 = w2_ref.shape[1]                 # 2 * units
    units = u2 // 2
    rows = tk * t

    # h2 = x @ [W | W]: both 64-lane halves hold the same h, so BN/relu/max
    # all run on full 128-lane vregs and the final pwf||laf "concat" is a
    # single lane-indexed select (no cross-lane concat relayout).
    h2 = jnp.dot(x_ref[...].reshape(rows, cin), w2_ref[...],
                 preferred_element_type=jnp.float32)           # (rows, 2*units)
    pwf = jnp.maximum(h2 * scale_ref[...] + shift_ref[...], 0.0)
    pwf = pwf.reshape(tk, t, u2)
    laf = jnp.broadcast_to(jnp.max(pwf, axis=1, keepdims=True), (tk, t, u2))
    lane = jax.lax.broadcasted_iota(jnp.int32, (tk, t, u2), 2)
    pwcf = jnp.where(lane < units, pwf, laf)                   # [pwf | max_T(pwf)]

    m = mask_ref[...].astype(jnp.float32)[:, :, None]
    # Lane-dense full-ref store (2*units multiple of 128 => unmasked vst).
    out_ref[...] = (pwcf * m).astype(out_ref.dtype)


# ---------------------------------------------------------------------------
# VMEM-aware tile sizing.
# ---------------------------------------------------------------------------
def _round_up(a, m):
    return (a + m - 1) // m * m


def _sublane(dtype):
    return 32 // jnp.dtype(dtype).itemsize


def _vmem_capacity_bytes():
    try:
        info = pltpu.get_tpu_info()
        cap = getattr(info, "vmem_capacity_bytes", None)
        if cap:
            return int(cap)
    except Exception:
        pass
    return 128 * 1024 * 1024


def _per_voxel_vmem_bytes(t, cin, units, compute_dtype, out_dtype):
    """Per-voxel VMEM footprint of one apply-kernel block, accounting for
    (sublane, 128-lane) padding of each tile's trailing two dims."""
    cb = jnp.dtype(compute_dtype).itemsize
    ob = jnp.dtype(out_dtype).itemsize
    x_b = _round_up(t, _sublane(compute_dtype)) * _round_up(cin, 128) * cb
    m_b = _round_up(t, 128) * cb
    o_b = _round_up(t, _sublane(out_dtype)) * _round_up(2 * units, 128) * ob
    return x_b + m_b + o_b


def _choose_block_k(K, t, cin, units, compute_dtype, out_dtype, budget_bytes):
    per_voxel = 2 * _per_voxel_vmem_bytes(t, cin, units, compute_dtype, out_dtype)
    cap = max(8, (int(budget_bytes) // per_voxel) // 8 * 8)
    # Tiles beyond ~1K voxels are deep into diminishing returns (>=85% of
    # HBM roofline already reached around tile 512).
    return max(8, min(cap, 1024, _round_up(K, 8)))


# ---------------------------------------------------------------------------
# Wrapper.
# ---------------------------------------------------------------------------
def vfe_forward(x, mask, w, b, gamma, beta, *, block_k=None,
                compute_dtype=jnp.bfloat16, out_dtype=jnp.float32,
                vmem_limit_bytes=None):
    # The linear bias is mathematically cancelled by the BN mean subtraction.
    del b
    K, T, cin = x.shape
    units = w.shape[1]

    vmem_cap = _vmem_capacity_bytes()
    if vmem_cap >= 100 * 1024 * 1024:          # v5e / v6e: 128 MiB VMEM
        budget, default_limit = 24 * 1024 * 1024, 64 * 1024 * 1024
    else:                                      # v7x: 64 MiB VMEM
        budget, default_limit = 14 * 1024 * 1024, 32 * 1024 * 1024
    if vmem_limit_bytes is None:
        vmem_limit_bytes = default_limit

    if block_k is None:
        block_k = _choose_block_k(K, T, cin, units, compute_dtype, out_dtype, budget)
    assert block_k % 8 == 0, "block_k must be a multiple of 8"

    n_k = (K + block_k - 1) // block_k
    k_pad = n_k * block_k
    padded = k_pad != K

    x_c = x.astype(compute_dtype)
    mask_c = mask.astype(compute_dtype)
    if padded:
        x_c = jnp.pad(x_c, ((0, k_pad - K), (0, 0), (0, 0)))
        mask_c = jnp.pad(mask_c, ((0, k_pad - K), (0, 0)))
    w_c = w.astype(compute_dtype)

    compiler_params = pltpu.CompilerParams(
        dimension_semantics=("parallel",),     # both passes shard K across cores
        vmem_limit_bytes=vmem_limit_bytes,
    )

    # ---- Pass A: per-tile BatchNorm statistics ----------------------------
    stats_kernel = functools.partial(vfe_stats_kernel, t=T, k_true=K, padded=padded)
    part_sum, part_m2 = pl.pallas_call(
        stats_kernel,
        out_shape=(jax.ShapeDtypeStruct((n_k, 1, units), jnp.float32),
                   jax.ShapeDtypeStruct((n_k, 1, units), jnp.float32)),
        grid_spec=pltpu.PrefetchScalarGridSpec(
            num_scalar_prefetch=0,
            grid=(n_k,),
            in_specs=[
                pl.BlockSpec((block_k, T, cin), lambda k: (k, 0, 0)),
                pl.BlockSpec((cin, units), lambda k: (0, 0)),
            ],
            out_specs=[
                pl.BlockSpec((1, 1, units), lambda k: (k, 0, 0)),
                pl.BlockSpec((1, 1, units), lambda k: (k, 0, 0)),
            ],
        ),
        compiler_params=compiler_params,
    )(x_c, w_c)

    # ---- Tiny Chan merge + BN fold in plain JAX ----------------------------
    n_rows = float(K * T)
    counts = jnp.asarray(
        [min(block_k, K - i * block_k) * T for i in range(n_k)],
        jnp.float32).reshape(n_k, 1)
    sums = part_sum.reshape(n_k, units)
    m2s = part_m2.reshape(n_k, units)
    mean = jnp.sum(sums, axis=0) / n_rows
    mu_k = sums / counts
    m2 = jnp.sum(m2s + counts * (mu_k - mean) ** 2, axis=0)
    var = m2 / n_rows                                   # biased var (BN training mode)
    g = jnp.asarray(gamma, jnp.float32).reshape(-1)
    be = jnp.asarray(beta, jnp.float32).reshape(-1)
    scale = g * jax.lax.rsqrt(var + BN_EPS)
    shift = be - mean * scale
    scale2 = jnp.concatenate([scale, scale]).reshape(1, 2 * units)
    shift2 = jnp.concatenate([shift, shift]).reshape(1, 2 * units)
    w2 = jnp.concatenate([w_c, w_c], axis=1)            # (cin, 2*units)

    # ---- Pass B: fused BN + relu + per-voxel max + mask --------------------
    apply_kernel = functools.partial(vfe_apply_kernel, t=T)
    out = pl.pallas_call(
        apply_kernel,
        out_shape=jax.ShapeDtypeStruct((k_pad, T, 2 * units), out_dtype),
        grid_spec=pltpu.PrefetchScalarGridSpec(
            num_scalar_prefetch=0,
            grid=(n_k,),
            in_specs=[
                pl.BlockSpec((block_k, T, cin), lambda k: (k, 0, 0)),
                pl.BlockSpec((block_k, T), lambda k: (k, 0)),
                pl.BlockSpec((cin, 2 * units), lambda k: (0, 0)),
                pl.BlockSpec((1, 2 * units), lambda k: (0, 0)),
                pl.BlockSpec((1, 2 * units), lambda k: (0, 0)),
            ],
            out_specs=pl.BlockSpec((block_k, T, 2 * units), lambda k: (k, 0, 0)),
        ),
        compiler_params=compiler_params,
    )(x_c, mask_c, w2, scale2, shift2)

    if padded:
        out = out[:K]
    return out


def vfe_reference(x, mask, w, b, gamma, beta):
    K, T, cin = x.shape
    units = w.shape[1]
    h = x.reshape(K * T, cin) @ w + b
    mean = jnp.mean(h, axis=0, keepdims=True)
    var = jnp.mean((h - mean) ** 2, axis=0, keepdims=True)
    h = (h - mean) * jax.lax.rsqrt(var + BN_EPS) * gamma + beta
    pwf = jnp.maximum(h, 0.0).reshape(K, T, units)
    laf = jnp.broadcast_to(jnp.max(pwf, axis=1, keepdims=True), (K, T, units))
    return jnp.concatenate([pwf, laf], axis=2) * mask[:, :, None]


if __name__ == "__main__":
    # Small but realistic VFE-2-like config: K voxels, T points per voxel,
    # cin input features, cout output channels; units = cout // 2 = 64, so the
    # output feature width 2*units = 128 stays lane-dense.
    K, T, cin, cout = 128, 8, 32, 128
    units = cout // 2

    key = jax.random.PRNGKey(0)
    kx, km, kw, kb, kg, kbe = jax.random.split(key, 6)

    x = jax.random.normal(kx, (K, T, cin), dtype=jnp.float32)
    mask = (jax.random.uniform(km, (K, T)) > 0.3).astype(jnp.float32)

    # Deterministic synthetic parameters (shapes from nn.Linear / nn.BatchNorm1d).
    w = 0.1 * jax.random.normal(kw, (cin, units), dtype=jnp.float32)          # linear weight.T
    b = 0.1 * jax.random.normal(kb, (1, units), dtype=jnp.float32)            # linear bias
    gamma = 1.0 + 0.1 * jax.random.normal(kg, (1, units), dtype=jnp.float32)  # bn weight
    beta = 0.1 * jax.random.normal(kbe, (1, units), dtype=jnp.float32)        # bn bias

    ref = vfe_reference(x, mask, w, b, gamma, beta)

    # 1) f32 compute path (exact-math check); block_k=32 -> 4 K-tiles,
    #    exercises the multi-tile Chan stats merge.
    out_f32 = vfe_forward(x, mask, w, b, gamma, beta, block_k=32,
                          compute_dtype=jnp.float32)
    out_f32 = jax.block_until_ready(out_f32)
    assert out_f32.shape == (K, T, 2 * units)
    assert jnp.allclose(out_f32, ref, atol=1e-4, rtol=1e-4), "f32 path mismatch"

    # 2) Default fast path: bf16 inputs/weights, f32 accumulation, f32 output.
    out_bf16 = vfe_forward(x, mask, w, b, gamma, beta, block_k=32)
    out_bf16 = jax.block_until_ready(out_bf16)
    assert jnp.allclose(out_bf16, ref, atol=5e-2, rtol=5e-2), "bf16 path mismatch"

    # 3) K not divisible by block_k: exercises zero-padding + masked stats.
    K2 = 100
    ref2 = vfe_reference(x[:K2], mask[:K2], w, b, gamma, beta)
    out2 = vfe_forward(x[:K2], mask[:K2], w, b, gamma, beta, block_k=32,
                       compute_dtype=jnp.float32)
    out2 = jax.block_until_ready(out2)
    assert out2.shape == (K2, T, 2 * units)
    assert jnp.allclose(out2, ref2, atol=1e-4, rtol=1e-4), "padded path mismatch"

    print("KERNEL_OK")
</pallas_src>

<mosaic_0001>
module attributes {stable_mosaic.version = 11 : i64} {
  func.func @vfe_stats_kernel(%arg0: i32, %arg1: memref<32x8x32xf32, #tpu.memory_space<vmem>>, %arg2: memref<32x64xf32, #tpu.memory_space<vmem>>, %arg3: memref<1x1x64xf32, #tpu.memory_space<vmem>>, %arg4: memref<1x1x64xf32, #tpu.memory_space<vmem>>) attributes {dimension_semantics = [#tpu.dimension_semantics<parallel>], iteration_bounds = array<i64: 4>, scalar_prefetch = 0 : i64, scratch_operands = 0 : i64, tpu.core_type = #tpu.core_type<tc>, window_params = [{transform_indices = @transform_0, window_bounds = array<i64: 32, 8, 32>}, {pipeline_mode = #tpu.pipeline_mode<synchronous>, transform_indices = @transform_1, window_bounds = array<i64: 32, 64>}, {transform_indices = @transform_2, window_bounds = array<i64: 1, 1, 64>}, {transform_indices = @transform_3, window_bounds = array<i64: 1, 1, 64>}]} {
    %c0 = arith.constant 0 : index
    %c0_0 = arith.constant 0 : index
    %c0_1 = arith.constant 0 : index
    %0 = vector.load %arg1[%c0, %c0_0, %c0_1] : memref<32x8x32xf32, #tpu.memory_space<vmem>>, vector<32x8x32xf32>
    %1 = vector.shape_cast %0 : vector<32x8x32xf32> to vector<256x32xf32>
    %c0_2 = arith.constant 0 : index
    %c0_3 = arith.constant 0 : index
    %2 = vector.load %arg2[%c0_2, %c0_3] : memref<32x64xf32, #tpu.memory_space<vmem>>, vector<32x64xf32>
    %cst = arith.constant dense<0.000000e+00> : vector<256x64xf32>
    %3 = tpu.matmul %1, %2, %cst {dimension_numbers = #tpu.dot_dimension_numbers<[1], [0], [0], [1], [0, 0, 1, 1], [], []>} : vector<256x32xf32>, vector<32x64xf32>, vector<256x64xf32> -> vector<256x64xf32>
    %cst_4 = arith.constant dense<0.000000e+00> : vector<64xf32>
    %4 = vector.multi_reduction <add>, %3, %cst_4 [0] : vector<256x64xf32> to vector<64xf32>
    %5 = vector.shape_cast %4 : vector<64xf32> to vector<1x64xf32>
    %cst_5 = arith.constant 3.906250e-03 : f32
    %6 = vector.broadcast %cst_5 : f32 to vector<1x64xf32>
    %7 = arith.mulf %5, %6 : vector<1x64xf32>
    %8 = vector.broadcast %7 : vector<1x64xf32> to vector<256x64xf32>
    %9 = arith.subf %3, %8 : vector<256x64xf32>
    %10 = arith.mulf %9, %9 : vector<256x64xf32>
    %cst_6 = arith.constant dense<0.000000e+00> : vector<64xf32>
    %11 = vector.multi_reduction <add>, %10, %cst_6 [0] : vector<256x64xf32> to vector<64xf32>
    %12 = vector.shape_cast %11 : vector<64xf32> to vector<1x64xf32>
    %13 = vector.shape_cast %5 : vector<1x64xf32> to vector<1x1x64xf32>
    %c0_7 = arith.constant 0 : index
    %c0_8 = arith.constant 0 : index
    %c0_9 = arith.constant 0 : index
    %14 = vector.load %arg3[%c0_7, %c0_8, %c0_9] : memref<1x1x64xf32, #tpu.memory_space<vmem>>, vector<1x1x64xf32>
    tpu.vector_store %arg3[%c0_7, %c0_8, %c0_9], %13 {strides = array<i32>} : memref<1x1x64xf32, #tpu.memory_space<vmem>>, vector<1x1x64xf32>,
    %15 = vector.shape_cast %12 : vector<1x64xf32> to vector<1x1x64xf32>
    %c0_10 = arith.constant 0 : index
    %c0_11 = arith.constant 0 : index
    %c0_12 = arith.constant 0 : index
    %16 = vector.load %arg4[%c0_10, %c0_11, %c0_12] : memref<1x1x64xf32, #tpu.memory_space<vmem>>, vector<1x1x64xf32>
    tpu.vector_store %arg4[%c0_10, %c0_11, %c0_12], %15 {strides = array<i32>} : memref<1x1x64xf32, #tpu.memory_space<vmem>>, vector<1x1x64xf32>,
    return
  }
  func.func @transform_0(%arg0: i32) -> (i32, i32, i32) {
    %c0_i32 = arith.constant 0 : i32
    %c0_i32_0 = arith.constant 0 : i32
    %c0_i32_1 = arith.constant 0 : i32
    return %arg0, %c0_i32, %c0_i32_0 : i32, i32, i32
  }
  func.func @transform_1(%arg0: i32) -> (i32, i32) {
    %c0_i32 = arith.constant 0 : i32
    %c0_i32_0 = arith.constant 0 : i32
    %c0_i32_1 = arith.constant 0 : i32
    return %c0_i32, %c0_i32_0 : i32, i32
  }
  func.func @transform_2(%arg0: i32) -> (i32, i32, i32) {
    %c0_i32 = arith.constant 0 : i32
    %c0_i32_0 = arith.constant 0 : i32
    %c0_i32_1 = arith.constant 0 : i32
    return %arg0, %c0_i32, %c0_i32_0 : i32, i32, i32
  }
  func.func @transform_3(%arg0: i32) -> (i32, i32, i32) {
    %c0_i32 = arith.constant 0 : i32
    %c0_i32_0 = arith.constant 0 : i32
    %c0_i32_1 = arith.constant 0 : i32
    return %arg0, %c0_i32, %c0_i32_0 : i32, i32, i32
  }
}

</mosaic_0001>

<llo_original>
// kernel: tpu_custom_call.1
$region0: #{tpu_custom_call.1}
  #allocation0 [shape = 'u32[]', space=smem, size = 0x4, offset = 0x4, fixed_abs, tag = 'smem constant byte address 0x4 - core index']
  #allocation1 [shape = 'u32[144,128]{1,0:T(1,128)}', space=vmem, size = 0x12000, scoped, tag = 'internal scratch']
  %s0 = inlined_call_operand.hbm [shape: f32[128,8,32], index: 0, kind: input, shape index: {}]
  %s1 = inlined_call_operand.hbm [shape: f32[32,64], index: 1, kind: input, shape index: {}]
  %s2 = inlined_call_operand.hbm [shape: f32[4,1,64], index: 2, kind: output, shape index: {0}]
  %s3 = inlined_call_operand.hbm [shape: f32[4,1,64], index: 3, kind: output, shape index: {1}]
  %4 = xla_tuple %s2, %s3
  %s5 = sld [smem:[#allocation0]]
  $region57: #{tpu_custom_call.1} parent=0
    _
  %s7 = ssub.s32 1, %s5
  %s8 = scalar_select 0, %s7, %s5
  $region1: #{tpu_custom_call.1} parent=0
    #allocation2 [shape = 'u8[262144]{0}', space=vmem, size = 0x40000, scoped, tag = 'input window, operand 0']
    #allocation3 [shape = 's32[2]{0}', space=sflag, size = 0x8, scoped, tag = 'scoped memory for tpu_custom_call.1']
    #allocation4 [shape = 's32[2]{0}', space=sflag, size = 0x8, scoped, tag = 'scoped memory for tpu_custom_call.1']
    #allocation5 [shape = 'u8[16384]{0}', space=vmem, size = 0x4000, scoped, tag = 'input window, operand 1, single buffered']
    #allocation6 [shape = 's32[1]{0}', space=sflag, size = 0x4, scoped, tag = 'scoped memory for tpu_custom_call.1']
    #allocation7 [shape = 'u8[1024]{0}', space=vmem, size = 0x400, scoped, tag = 'output window, operand 0']
    #allocation8 [shape = 'u8[1024]{0}', space=vmem, size = 0x400, scoped, tag = 'output window, operand 1']
    #allocation9 [shape = 's32[2]{0}', space=sflag, size = 0x8, scoped, tag = 'scoped memory for tpu_custom_call.1']
    %9 = vsyncpa [#allocation3], 0
    %s10 = scalar_lea.sflag [#allocation3], 1
    %11 = vsyncpa %s10, 0
    %12 = vsyncpa [#allocation6], 0
    %13 = vsyncpa [#allocation4], 0
    %s14 = scalar_lea.sflag [#allocation4], 1
    %15 = vsyncpa %s14, 0
    %16 = vsyncpa [#allocation9], 0
    %s17 = scalar_lea.sflag [#allocation9], 1
    %18 = vsyncpa %s17, 0
    loop: start=0, step=1, limit=6
    $region2: #{tpu_custom_call.1} parent=1 // loop_pre_header
      _
    $region3: #{tpu_custom_call.1} parent=1 // loop_header
      %s20 = sphi 0, %s24
      %p21 = scmp.ge.s32.totalorder %s20, 6
      %s30 = sphi 0, %s32
      %s33 = sphi 0, %s30
      %s34 = sphi 0, %s33
      %s50 = sphi 0, %s34
      %s54 = sphi 0, %s54
      %s56 = sphi 0, %s54
      %s57 = sphi 0, %s56
      %s71 = sphi 0, %s57
      %s77 = sphi 0, %s79
      %s80 = sphi 0, %s77
      %s81 = sphi 0, %s80
      %s97 = sphi 0, %s81
      %s103 = sphi 0, %s105
      %s106 = sphi 0, %s103
      %s107 = sphi 0, %s106
      %s123 = sphi 0, %s107
    $region4: #{tpu_custom_call.1} parent=1 // loop_header_branch
      %23 = sbr.rel (%p21) target = $region8
    $region5: #{tpu_custom_call.1} parent=1 // loop_body
      %s25 = ssub.s32 %s20, 1
      %s26 = ssub.s32 %s20, 2
      %s27 = sadd.s32 %s20, 1
      %s28 = ssub.s32 %s20, %s27
      %p29 = scmp.eq.s32.totalorder %s28, 0
      %s31 = sadd.s32 %s30, 1
      %s32 = scalar_select %p29, %s30, %s31
      %p35 = pneg %p29
      %p36 = scmp.eq.s32.totalorder %s20, 3
      %p37 = por %p35, %p36
      %p38 = scmp.ne.s32.totalorder %s30, %s33
      %p39 = scmp.eq.s32.totalorder %s20, 0
      %p40 = por %p38, %p39
      %p41 = scmp.ne.s32.totalorder %s30, %s33
      %p42 = scmp.eq.s32.totalorder %s25, 3
      %p43 = por %p41, %p42
      %p44 = scmp.ne.s32.totalorder %s33, %s34
      %p45 = scmp.eq.s32.totalorder %s25, 0
      %p46 = por %p44, %p45
      %p47 = scmp.ne.s32.totalorder %s33, %s34
      %p48 = scmp.eq.s32.totalorder %s26, 3
      %p49 = por %p47, %p48
      %p51 = scmp.ne.s32.totalorder %s34, %s50
      %p52 = scmp.eq.s32.totalorder %s26, 0
      %p53 = por %p51, %p52
      %s55 = sadd.s32 %s54, 1
      %p58 = scmp.eq.s32.totalorder %s20, 3
      %p59 = scmp.ne.s32.totalorder %s54, %s56
      %p60 = scmp.eq.s32.totalorder %s20, 0
      %p61 = por %p59, %p60
      %p62 = scmp.ne.s32.totalorder %s54, %s56
      %p63 = scmp.eq.s32.totalorder %s25, 3
      %p64 = por %p62, %p63
      %p65 = scmp.ne.s32.totalorder %s56, %s57
      %p66 = scmp.eq.s32.totalorder %s25, 0
      %p67 = por %p65, %p66
      %p68 = scmp.ne.s32.totalorder %s56, %s57
      %p69 = scmp.eq.s32.totalorder %s26, 3
      %p70 = por %p68, %p69
      %p72 = scmp.ne.s32.totalorder %s57, %s71
      %p73 = scmp.eq.s32.totalorder %s26, 0
      %p74 = por %p72, %p73
      %s75 = ssub.s32 %s20, %s27
      %p76 = scmp.eq.s32.totalorder %s75, 0
      %s78 = sadd.s32 %s77, 1
      %s79 = scalar_select %p76, %s77, %s78
      %p82 = pneg %p76
      %p83 = scmp.eq.s32.totalorder %s20, 3
      %p84 = por %p82, %p83
      %p85 = scmp.ne.s32.totalorder %s77, %s80
      %p86 = scmp.eq.s32.totalorder %s20, 0
      %p87 = por %p85, %p86
      %p88 = scmp.ne.s32.totalorder %s77, %s80
      %p89 = scmp.eq.s32.totalorder %s25, 3
      %p90 = por %p88, %p89
      %p91 = scmp.ne.s32.totalorder %s80, %s81
      %p92 = scmp.eq.s32.totalorder %s25, 0
      %p93 = por %p91, %p92
      %p94 = scmp.ne.s32.totalorder %s80, %s81
      %p95 = scmp.eq.s32.totalorder %s26, 3
      %p96 = por %p94, %p95
      %p98 = scmp.ne.s32.totalorder %s81, %s97
      %p99 = scmp.eq.s32.totalorder %s26, 0
      %p100 = por %p98, %p99
      %s101 = ssub.s32 %s20, %s27
      %p102 = scmp.eq.s32.totalorder %s101, 0
      %s104 = sadd.s32 %s103, 1
      %s105 = scalar_select %p102, %s103, %s104
      %p108 = pneg %p102
      %p109 = scmp.eq.s32.totalorder %s20, 3
      %p110 = por %p108, %p109
      %p111 = scmp.ne.s32.totalorder %s103, %s106
      %p112 = scmp.eq.s32.totalorder %s20, 0
      %p113 = por %p111, %p112
      %p114 = scmp.ne.s32.totalorder %s103, %s106
      %p115 = scmp.eq.s32.totalorder %s25, 3
      %p116 = por %p114, %p115
      %p117 = scmp.ne.s32.totalorder %s106, %s107
      %p118 = scmp.eq.s32.totalorder %s25, 0
      %p119 = por %p117, %p118
      %p120 = scmp.ne.s32.totalorder %s106, %s107
      %p121 = scmp.eq.s32.totalorder %s26, 3
      %p122 = por %p120, %p121
      %p124 = scmp.ne.s32.totalorder %s107, %s123
      %p125 = scmp.eq.s32.totalorder %s26, 0
      %p126 = por %p124, %p125
      %p127 = scmp.le.s32.totalorder 1, %s20
      %p128 = scmp.lt.s32.totalorder %s20, 5
      %p129 = pnand %p127, %p128
      %p130 = pneg %p129
      // Predicated region
      $region9: #{tpu_custom_call.1} parent=5 // pred_check
        _
      $region10: #{tpu_custom_call.1} parent=5 // pred_check_branch
        %132 = sbr.rel (%p129) target = $region12
      $region11: #{tpu_custom_call.1} parent=5 // pred_region
        %s133 = ssub.s32 %s20, 1
        // Predicated region
        $region13: #{tpu_custom_call.1} parent=11 // pred_check
          %p134 = pneg %p67
        $region14: #{tpu_custom_call.1} parent=11 // pred_check_branch
          %136 = sbr.rel (%p134) target = $region16
        $region15: #{tpu_custom_call.1} parent=11 // pred_region
          %s138 = ssub.s32 512, 512
          %139 = vsyncadd [#allocation6], %s138
          %s140 = sshll.u32 [#allocation5], 4
          %s141 = int_to_ptr.vmem [resolvable:$true] %s140
          %146 = dma.hbm_to_vmem [thread:$0]  %s1, 512, %s141, [#allocation6], 128, 128, 8
        $region16: #{tpu_custom_call.1} parent=11 // pred_fallthru
          _
      $region12: #{tpu_custom_call.1} parent=5 // pred_fallthru
        _
      %p147 = scmp.lt.s32.totalorder %s20, 4
      // Predicated region
      $region17: #{tpu_custom_call.1} parent=5 // pred_check
        %p148 = pneg %p147
      $region18: #{tpu_custom_call.1} parent=5 // pred_check_branch
        %150 = sbr.rel (%p148) target = $region20
      $region19: #{tpu_custom_call.1} parent=5 // pred_region
        // Predicated region
        $region21: #{tpu_custom_call.1} parent=19 // pred_check
          %p151 = pneg %p40
        $region22: #{tpu_custom_call.1} parent=19 // pred_check_branch
          %153 = sbr.rel (%p151) target = $region24
        $region23: #{tpu_custom_call.1} parent=19 // pred_region
          %s154 = sand.u32 %s30, 1
          %s155 = scalar_lea.sflag [#allocation3], %s154
          %s156 = sand.u32 %s30, 1
          %s157 = smul.addr %s156, 256
          %s158 = scalar_lea.vmem [#allocation2], %s157
          %s159 = smul.u32 32, %s20
          %s161 = ssub.s32 4096, 4096
          %162 = vsyncadd %s155, %s161
          %s163 = smul.addr %s159, 128
          %s164 = scalar_lea.hbm %s0, %s163
          %s165 = sshll.u32 %s158, 4
          %s166 = int_to_ptr.vmem [resolvable:$true] %s165
          %171 = dma.hbm_to_vmem [thread:$0]  %s164, 4096, %s166, %s155, 128, 128, 8
        $region24: #{tpu_custom_call.1} parent=19 // pred_fallthru
          _
      $region20: #{tpu_custom_call.1} parent=5 // pred_fallthru
        _
      %p172 = scmp.le.s32.totalorder 1, %s20
      %p173 = scmp.lt.s32.totalorder %s20, 5
      %p174 = pnand %p172, %p173
      %p175 = pneg %p174
      // Predicated region
      $region25: #{tpu_custom_call.1} parent=5 // pred_check
        _
      $region26: #{tpu_custom_call.1} parent=5 // pred_check_branch
        %177 = sbr.rel (%p174) target = $region28
      $region27: #{tpu_custom_call.1} parent=5 // pred_region
        %s178 = ssub.s32 %s20, 1
        %s179 = sand.u32 %s33, 1
        %s180 = scalar_lea.sflag [#allocation3], %s179
        %s181 = sand.u32 %s33, 1
        %s182 = smul.addr %s181, 256
        %s183 = scalar_lea.vmem [#allocation2], %s182
        // Predicated region
        $region29: #{tpu_custom_call.1} parent=27 // pred_check
          %p184 = pneg %p46
        $region30: #{tpu_custom_call.1} parent=27 // pred_check_branch
          %186 = sbr.rel (%p184) target = $region32
        $region31: #{tpu_custom_call.1} parent=27 // pred_region
          %187 = dma.done %s180, 4096
        $region32: #{tpu_custom_call.1} parent=27 // pred_fallthru
          _
        // Predicated region
        $region33: #{tpu_custom_call.1} parent=27 // pred_check
          %p188 = pneg %p67
        $region34: #{tpu_custom_call.1} parent=27 // pred_check_branch
          %190 = sbr.rel (%p188) target = $region36
        $region35: #{tpu_custom_call.1} parent=27 // pred_region
          %191 = dma.done [#allocation6], 512
        $region36: #{tpu_custom_call.1} parent=27 // pred_fallthru
          _
        %s192 = sand.u32 %s33, 1
        %s193 = scalar_lea.sflag [#allocation3], %s192
        %s194 = sand.u32 %s33, 1
        %s195 = smul.addr %s194, 256
        %s196 = scalar_lea.vmem [#allocation2], %s195
        %p197 = pneg %p46
        %p198 = pneg %p43
        %p199 = pneg %p67
        %p200 = pneg %p64
        %p201 = pneg %p93
        %p202 = pneg %p90
        %s203 = sand.u32 %s80, 1
        %s204 = scalar_lea.sflag [#allocation4], %s203
        %s205 = sand.u32 %s80, 1
        %s206 = scalar_lea.vmem [#allocation7], %s205
        %p207 = pneg %p119
        %p208 = pneg %p116
        %s209 = sand.u32 %s106, 1
        %s210 = scalar_lea.sflag [#allocation9], %s209
        %s211 = sand.u32 %s106, 1
        %s212 = scalar_lea.vmem [#allocation8], %s211
        %s213 = smul.u32 32, %s25
        %v214 = vld [vmem:[%s183] sm:$0xff]
        %v215 = vld [vmem:[%s183 + $0x8] sm:$0xff]
        %v216 = vld [vmem:[%s183 + $0x10] sm:$0xff]
        %v217 = vld [vmem:[%s183 + $0x18] sm:$0xff]
        %v218 = vld [vmem:[%s183 + $0x20] sm:$0xff]
        %v219 = vld [vmem:[%s183 + $0x28] sm:$0xff]
        %v220 = vld [vmem:[%s183 + $0x30] sm:$0xff]
        %v221 = vld [vmem:[%s183 + $0x38] sm:$0xff]
        %v222 = vld [vmem:[%s183 + $0x40] sm:$0xff]
        %v223 = vld [vmem:[%s183 + $0x48] sm:$0xff]
        %v224 = vld [vmem:[%s183 + $0x50] sm:$0xff]
        %v225 = vld [vmem:[%s183 + $0x58] sm:$0xff]
        %v226 = vld [vmem:[%s183 + $0x60] sm:$0xff]
        %v227 = vld [vmem:[%s183 + $0x68] sm:$0xff]
        %v228 = vld [vmem:[%s183 + $0x70] sm:$0xff]
        %v229 = vld [vmem:[%s183 + $0x78] sm:$0xff]
        %v230 = vld [vmem:[%s183 + $0x80] sm:$0xff]
        %v231 = vld [vmem:[%s183 + $0x88] sm:$0xff]
        %v232 = vld [vmem:[%s183 + $0x90] sm:$0xff]
        %v233 = vld [vmem:[%s183 + $0x98] sm:$0xff]
        %v234 = vld [vmem:[%s183 + $0xa0] sm:$0xff]
        %v235 = vld [vmem:[%s183 + $0xa8] sm:$0xff]
        %v236 = vld [vmem:[%s183 + $0xb0] sm:$0xff]
        %v237 = vld [vmem:[%s183 + $0xb8] sm:$0xff]
        %v238 = vld [vmem:[%s183 + $0xc0] sm:$0xff]
        %v239 = vld [vmem:[%s183 + $0xc8] sm:$0xff]
        %v240 = vld [vmem:[%s183 + $0xd0] sm:$0xff]
        %v241 = vld [vmem:[%s183 + $0xd8] sm:$0xff]
        %v242 = vld [vmem:[%s183 + $0xe0] sm:$0xff]
        %v243 = vld [vmem:[%s183 + $0xe8] sm:$0xff]
        %v244 = vld [vmem:[%s183 + $0xf0] sm:$0xff]
        %v245 = vld [vmem:[%s183 + $0xf8] sm:$0xff]
        %v246 = vld [vmem:[#allocation5] sm:$0xff]
        %v247 = vld [vmem:[#allocation5 + $0x8] sm:$0xff]
        %v248 = vld [vmem:[#allocation5 + $0x10] sm:$0xff]
        %v249 = vld [vmem:[#allocation5 + $0x18] sm:$0xff]
        %vm250 = vcmask 261120
        %v252 = vsel %vm250, %v214, 0
        %v255 = vsel %vm250, %v215, 0
        %v258 = vsel %vm250, %v216, 0
        %v261 = vsel %vm250, %v217, 0
        %v264 = vsel %vm250, %v218, 0
        %v267 = vsel %vm250, %v219, 0
        %v270 = vsel %vm250, %v220, 0
        %v273 = vsel %vm250, %v221, 0
        %v276 = vsel %vm250, %v222, 0
        %v279 = vsel %vm250, %v223, 0
        %v282 = vsel %vm250, %v224, 0
        %v285 = vsel %vm250, %v225, 0
        %v288 = vsel %vm250, %v226, 0
        %v291 = vsel %vm250, %v227, 0
        %v294 = vsel %vm250, %v228, 0
        %v297 = vsel %vm250, %v229, 0
        %v300 = vsel %vm250, %v230, 0
        %v303 = vsel %vm250, %v231, 0
        %v306 = vsel %vm250, %v232, 0
        %v309 = vsel %vm250, %v233, 0
        %v312 = vsel %vm250, %v234, 0
        %v315 = vsel %vm250, %v235, 0
        %v318 = vsel %vm250, %v236, 0
        %v321 = vsel %vm250, %v237, 0
        %v324 = vsel %vm250, %v238, 0
        %v327 = vsel %vm250, %v239, 0
        %v330 = vsel %vm250, %v240, 0
        %v333 = vsel %vm250, %v241, 0
        %v336 = vsel %vm250, %v242, 0
        %v339 = vsel %vm250, %v243, 0
        %v342 = vsel %vm250, %v244, 0
        %v345 = vsel %vm250, %v245, 0
        %347 = vmatprep.subr.mxu0 0.0
        %348 = vmatpush1.msra.mxu0 %v246
        %349 = vmatprep.subr.mxu0 0.0
        %350 = vmatpush1.msra.mxu0 %v247
        %351 = vmatprep.subr.mxu0 0.0
        %352 = vmatpush1.msra.mxu0 %v248
        %353 = vmatprep.subr.mxu0 0.0
        %354 = vmatpush1.msra.mxu0 %v249
        %355 = vmatprep.subr.mxu0 0.0
        %356 = vmatpush1.msra.mxu0 0.0
        %357 = vmatprep.subr.mxu0 0.0
        %358 = vmatpush1.msra.mxu0 0.0
        %359 = vmatprep.subr.mxu0 0.0
        %360 = vmatpush1.msra.mxu0 0.0
        %361 = vmatprep.subr.mxu0 0.0
        %362 = vmatpush1.msra.mxu0 0.0
        %363 = vmatprep.subr.mxu0 0.0
        %364 = vmatpush1.msra.mxu0 0.0
        %365 = vmatprep.subr.mxu0 0.0
        %366 = vmatpush1.msra.mxu0 0.0
        %367 = vmatprep.subr.mxu0 0.0
        %368 = vmatpush1.msra.mxu0 0.0
        %369 = vmatprep.subr.mxu0 0.0
        %370 = vmatpush1.msra.mxu0 0.0
        %371 = vmatprep.subr.mxu0 0.0
        %372 = vmatpush1.msra.mxu0 0.0
        %373 = vmatprep.subr.mxu0 0.0
        %374 = vmatpush1.msra.mxu0 0.0
        %375 = vmatprep.subr.mxu0 0.0
        %376 = vmatpush1.msra.mxu0 0.0
        %377 = vmatprep.subr.mxu0 0.0
        %378 = vmatpush1.msra.mxu0 0.0
        %379 = vmatprep.subr.mxu0 0.0
        %380 = vmatpush1.msra.mxu0 0.0
        %381 = vmatprep.subr.mxu0 0.0
        %382 = vmatpush1.msra.mxu0 0.0
        %383 = vmatprep.subr.mxu0 0.0
        %384 = vmatpush1.msra.mxu0 0.0
        %385 = vmatprep.subr.mxu0 0.0
        %386 = vmatpush1.msra.mxu0 0.0
        %387 = vmatprep.subr.mxu0 0.0
        %388 = vmatpush1.msra.mxu0 0.0
        %389 = vmatprep.subr.mxu0 0.0
        %390 = vmatpush1.msra.mxu0 0.0
        %391 = vmatprep.subr.mxu0 0.0
        %392 = vmatpush1.msra.mxu0 0.0
        %393 = vmatprep.subr.mxu0 0.0
        %394 = vmatpush1.msra.mxu0 0.0
        %395 = vmatprep.subr.mxu0 0.0
        %396 = vmatpush1.msra.mxu0 0.0
        %397 = vmatprep.subr.mxu0 0.0
        %398 = vmatpush1.msra.mxu0 0.0
        %399 = vmatprep.subr.mxu0 0.0
        %400 = vmatpush1.msra.mxu0 0.0
        %401 = vmatprep.subr.mxu0 0.0
        %402 = vmatpush1.msra.mxu0 0.0
        %403 = vmatprep.subr.mxu0 0.0
        %404 = vmatpush1.msra.mxu0 0.0
        %405 = vmatprep.subr.mxu0 0.0
        %406 = vmatpush1.msra.mxu0 0.0
        %407 = vmatprep.subr.mxu0 0.0
        %408 = vmatpush1.msra.mxu0 0.0
        %409 = vmatprep.subr.mxu0 0.0
        %410 = vmatpush1.msra.mxu0 0.0
        %411 = vmatprep.mubr.f32.mxu0 0.0
        %412 = vmatmul.mubr.f32.gmra.mrb[0].mxu0 %v252
        %v413 = vpop.f32.mrb[0].mxu0
        %v414 = vadd.f32 0.0, %v413
        %v415 = vpop.f32.mrb[0].mxu0
        %416 = vmatprep.mubr.f32.mxu0 0.0
        %417 = vmatmul.mubr.f32.gmra.mrb[0].mxu0 %v255
        %v418 = vpop.f32.mrb[0].mxu0
        %v419 = vadd.f32 0.0, %v418
        %v420 = vpop.f32.mrb[0].mxu0
        %421 = vmatprep.mubr.f32.mxu0 0.0
        %422 = vmatmul.mubr.f32.gmra.mrb[0].mxu0 %v258
        %v423 = vpop.f32.mrb[0].mxu0
        %v424 = vadd.f32 0.0, %v423
        %v425 = vpop.f32.mrb[0].mxu0
        %426 = vmatprep.mubr.f32.mxu0 0.0
        %427 = vmatmul.mubr.f32.gmra.mrb[0].mxu0 %v261
        %v428 = vpop.f32.mrb[0].mxu0
        %v429 = vadd.f32 0.0, %v428
        %v430 = vpop.f32.mrb[0].mxu0
        %431 = vmatprep.mubr.f32.mxu0 0.0
        %432 = vmatmul.mubr.f32.gmra.mrb[0].mxu0 %v264
        %v433 = vpop.f32.mrb[0].mxu0
        %v434 = vadd.f32 0.0, %v433
        %v435 = vpop.f32.mrb[0].mxu0
        %436 = vmatprep.mubr.f32.mxu0 0.0
        %437 = vmatmul.mubr.f32.gmra.mrb[0].mxu0 %v267
        %v438 = vpop.f32.mrb[0].mxu0
        %v439 = vadd.f32 0.0, %v438
        %v440 = vpop.f32.mrb[0].mxu0
        %441 = vmatprep.mubr.f32.mxu0 0.0
        %442 = vmatmul.mubr.f32.gmra.mrb[0].mxu0 %v270
        %v443 = vpop.f32.mrb[0].mxu0
        %v444 = vadd.f32 0.0, %v443
        %v445 = vpop.f32.mrb[0].mxu0
        %446 = vmatprep.mubr.f32.mxu0 0.0
        %447 = vmatmul.mubr.f32.gmra.mrb[0].mxu0 %v273
        %v448 = vpop.f32.mrb[0].mxu0
        %v449 = vadd.f32 0.0, %v448
        %v450 = vpop.f32.mrb[0].mxu0
        %451 = vmatprep.mubr.f32.mxu0 0.0
        %452 = vmatmul.mubr.f32.gmra.mrb[0].mxu0 %v276
        %v453 = vpop.f32.mrb[0].mxu0
        %v454 = vadd.f32 0.0, %v453
        %v455 = vpop.f32.mrb[0].mxu0
        %456 = vmatprep.mubr.f32.mxu0 0.0
        %457 = vmatmul.mubr.f32.gmra.mrb[0].mxu0 %v279
        %v458 = vpop.f32.mrb[0].mxu0
        %v459 = vadd.f32 0.0, %v458
        %v460 = vpop.f32.mrb[0].mxu0
        %461 = vmatprep.mubr.f32.mxu0 0.0
        %462 = vmatmul.mubr.f32.gmra.mrb[0].mxu0 %v282
        %v463 = vpop.f32.mrb[0].mxu0
        %v464 = vadd.f32 0.0, %v463
        %v465 = vpop.f32.mrb[0].mxu0
        %466 = vmatprep.mubr.f32.mxu0 0.0
        %467 = vmatmul.mubr.f32.gmra.mrb[0].mxu0 %v285
        %v468 = vpop.f32.mrb[0].mxu0
        %v469 = vadd.f32 0.0, %v468
        %v470 = vpop.f32.mrb[0].mxu0
        %471 = vmatprep.mubr.f32.mxu0 0.0
        %472 = vmatmul.mubr.f32.gmra.mrb[0].mxu0 %v288
        %v473 = vpop.f32.mrb[0].mxu0
        %v474 = vadd.f32 0.0, %v473
        %v475 = vpop.f32.mrb[0].mxu0
        %476 = vmatprep.mubr.f32.mxu0 0.0
        %477 = vmatmul.mubr.f32.gmra.mrb[0].mxu0 %v291
        %v478 = vpop.f32.mrb[0].mxu0
        %v479 = vadd.f32 0.0, %v478
        %v480 = vpop.f32.mrb[0].mxu0
        %481 = vmatprep.mubr.f32.mxu0 0.0
        %482 = vmatmul.mubr.f32.gmra.mrb[0].mxu0 %v294
        %v483 = vpop.f32.mrb[0].mxu0
        %v484 = vadd.f32 0.0, %v483
        %v485 = vpop.f32.mrb[0].mxu0
        %486 = vmatprep.mubr.f32.mxu0 0.0
        %487 = vmatmul.mubr.f32.gmra.mrb[0].mxu0 %v297
        %v488 = vpop.f32.mrb[0].mxu0
        %v489 = vadd.f32 0.0, %v488
        %v490 = vpop.f32.mrb[0].mxu0
        %491 = vmatprep.mubr.f32.mxu0 0.0
        %492 = vmatmul.mubr.f32.gmra.mrb[0].mxu0 %v300
        %v493 = vpop.f32.mrb[0].mxu0
        %v494 = vadd.f32 0.0, %v493
        %v495 = vpop.f32.mrb[0].mxu0
        %496 = vmatprep.mubr.f32.mxu0 0.0
        %497 = vmatmul.mubr.f32.gmra.mrb[0].mxu0 %v303
        %v498 = vpop.f32.mrb[0].mxu0
        %v499 = vadd.f32 0.0, %v498
        %v500 = vpop.f32.mrb[0].mxu0
        %501 = vmatprep.mubr.f32.mxu0 0.0
        %502 = vmatmul.mubr.f32.gmra.mrb[0].mxu0 %v306
        %v503 = vpop.f32.mrb[0].mxu0
        %v504 = vadd.f32 0.0, %v503
        %v505 = vpop.f32.mrb[0].mxu0
        %506 = vmatprep.mubr.f32.mxu0 0.0
        %507 = vmatmul.mubr.f32.gmra.mrb[0].mxu0 %v309
        %v508 = vpop.f32.mrb[0].mxu0
        %v509 = vadd.f32 0.0, %v508
        %v510 = vpop.f32.mrb[0].mxu0
        %511 = vmatprep.mubr.f32.mxu0 0.0
        %512 = vmatmul.mubr.f32.gmra.mrb[0].mxu0 %v312
        %v513 = vpop.f32.mrb[0].mxu0
        %v514 = vadd.f32 0.0, %v513
        %v515 = vpop.f32.mrb[0].mxu0
        %516 = vmatprep.mubr.f32.mxu0 0.0
        %517 = vmatmul.mubr.f32.gmra.mrb[0].mxu0 %v315
        %v518 = vpop.f32.mrb[0].mxu0
        %v519 = vadd.f32 0.0, %v518
        %v520 = vpop.f32.mrb[0].mxu0
        %521 = vmatprep.mubr.f32.mxu0 0.0
        %522 = vmatmul.mubr.f32.gmra.mrb[0].mxu0 %v318
        %v523 = vpop.f32.mrb[0].mxu0
        %v524 = vadd.f32 0.0, %v523
        %v525 = vpop.f32.mrb[0].mxu0
        %526 = vmatprep.mubr.f32.mxu0 0.0
        %527 = vmatmul.mubr.f32.gmra.mrb[0].mxu0 %v321
        %v528 = vpop.f32.mrb[0].mxu0
        %v529 = vadd.f32 0.0, %v528
        %v530 = vpop.f32.mrb[0].mxu0
        %531 = vmatprep.mubr.f32.mxu0 0.0
        %532 = vmatmul.mubr.f32.gmra.mrb[0].mxu0 %v324
        %v533 = vpop.f32.mrb[0].mxu0
        %v534 = vadd.f32 0.0, %v533
        %v535 = vpop.f32.mrb[0].mxu0
        %536 = vmatprep.mubr.f32.mxu0 0.0
        %537 = vmatmul.mubr.f32.gmra.mrb[0].mxu0 %v327
        %v538 = vpop.f32.mrb[0].mxu0
        %v539 = vadd.f32 0.0, %v538
        %v540 = vpop.f32.mrb[0].mxu0
        %541 = vmatprep.mubr.f32.mxu0 0.0
        %542 = vmatmul.mubr.f32.gmra.mrb[0].mxu0 %v330
        %v543 = vpop.f32.mrb[0].mxu0
        %v544 = vadd.f32 0.0, %v543
        %v545 = vpop.f32.mrb[0].mxu0
        %546 = vmatprep.mubr.f32.mxu0 0.0
        %547 = vmatmul.mubr.f32.gmra.mrb[0].mxu0 %v333
        %v548 = vpop.f32.mrb[0].mxu0
        %v549 = vadd.f32 0.0, %v548
        %v550 = vpop.f32.mrb[0].mxu0
        %551 = vmatprep.mubr.f32.mxu0 0.0
        %552 = vmatmul.mubr.f32.gmra.mrb[0].mxu0 %v336
        %v553 = vpop.f32.mrb[0].mxu0
        %v554 = vadd.f32 0.0, %v553
        %v555 = vpop.f32.mrb[0].mxu0
        %556 = vmatprep.mubr.f32.mxu0 0.0
        %557 = vmatmul.mubr.f32.gmra.mrb[0].mxu0 %v339
        %v558 = vpop.f32.mrb[0].mxu0
        %v559 = vadd.f32 0.0, %v558
        %v560 = vpop.f32.mrb[0].mxu0
        %561 = vmatprep.mubr.f32.mxu0 0.0
        %562 = vmatmul.mubr.f32.gmra.mrb[0].mxu0 %v342
        %v563 = vpop.f32.mrb[0].mxu0
        %v564 = vadd.f32 0.0, %v563
        %v565 = vpop.f32.mrb[0].mxu0
        %566 = vmatprep.mubr.f32.mxu0 0.0
        %567 = vmatmul.mubr.f32.gmra.mrb[0].mxu0 %v345
        %v568 = vpop.f32.mrb[0].mxu0
        %v569 = vadd.f32 0.0, %v568
        %v570 = vpop.f32.mrb[0].mxu0
        %571 = vdwg.mxu0
        %vm572 = vcmask 523264
        %v573 = vsel %vm572, %v414, 0.0
        %v574 = vsel %vm572, %v419, 0.0
        %v575 = vadd.f32 %v573, %v574
        %v576 = vsel %vm572, %v424, 0.0
        %v577 = vadd.f32 %v575, %v576
        %v578 = vsel %vm572, %v429, 0.0
        %v579 = vadd.f32 %v577, %v578
        %v580 = vsel %vm572, %v434, 0.0
        %v581 = vadd.f32 %v579, %v580
        %v582 = vsel %vm572, %v439, 0.0
        %v583 = vadd.f32 %v581, %v582
        %v584 = vsel %vm572, %v444, 0.0
        %v585 = vadd.f32 %v583, %v584
        %v586 = vsel %vm572, %v449, 0.0
        %v587 = vadd.f32 %v585, %v586
        %v588 = vsel %vm572, %v454, 0.0
        %v589 = vadd.f32 %v587, %v588
        %v590 = vsel %vm572, %v459, 0.0
        %v591 = vadd.f32 %v589, %v590
        %v592 = vsel %vm572, %v464, 0.0
        %v593 = vadd.f32 %v591, %v592
        %v594 = vsel %vm572, %v469, 0.0
        %v595 = vadd.f32 %v593, %v594
        %v596 = vsel %vm572, %v474, 0.0
        %v597 = vadd.f32 %v595, %v596
        %v598 = vsel %vm572, %v479, 0.0
        %v599 = vadd.f32 %v597, %v598
        %v600 = vsel %vm572, %v484, 0.0
        %v601 = vadd.f32 %v599, %v600
        %v602 = vsel %vm572, %v489, 0.0
        %v603 = vadd.f32 %v601, %v602
        %v604 = vsel %vm572, %v494, 0.0
        %v605 = vadd.f32 %v603, %v604
        %v606 = vsel %vm572, %v499, 0.0
        %v607 = vadd.f32 %v605, %v606
        %v608 = vsel %vm572, %v504, 0.0
        %v609 = vadd.f32 %v607, %v608
        %v610 = vsel %vm572, %v509, 0.0
        %v611 = vadd.f32 %v609, %v610
        %v612 = vsel %vm572, %v514, 0.0
        %v613 = vadd.f32 %v611, %v612
        %v614 = vsel %vm572, %v519, 0.0
        %v615 = vadd.f32 %v613, %v614
        %v616 = vsel %vm572, %v524, 0.0
        %v617 = vadd.f32 %v615, %v616
        %v618 = vsel %vm572, %v529, 0.0
        %v619 = vadd.f32 %v617, %v618
        %v620 = vsel %vm572, %v534, 0.0
        %v621 = vadd.f32 %v619, %v620
        %v622 = vsel %vm572, %v539, 0.0
        %v623 = vadd.f32 %v621, %v622
        %v624 = vsel %vm572, %v544, 0.0
        %v625 = vadd.f32 %v623, %v624
        %v626 = vsel %vm572, %v549, 0.0
        %v627 = vadd.f32 %v625, %v626
        %v628 = vsel %vm572, %v554, 0.0
        %v629 = vadd.f32 %v627, %v628
        %v630 = vsel %vm572, %v559, 0.0
        %v631 = vadd.f32 %v629, %v630
        %v632 = vsel %vm572, %v564, 0.0
        %v633 = vadd.f32 %v631, %v632
        %v634 = vsel %vm572, %v569, 0.0
        %v635 = vadd.f32 %v633, %v634
        %v636 = vrot.slane %v635, 4
        %v637 = vadd.f32 %v635, %v636
        %v638 = vrot.slane %v637, 2
        %v639 = vadd.f32 %v637, %v638
        %v640 = vrot.slane %v639, 1
        %v641 = vadd.f32 %v639, %v640
        %v642 = vmul.f32 %v641, 0.00390625
        %v643 = vsub.f32 %v414, %v642
        %v644 = vsub.f32 %v419, %v642
        %v645 = vsub.f32 %v424, %v642
        %v646 = vsub.f32 %v429, %v642
        %v647 = vsub.f32 %v434, %v642
        %v648 = vsub.f32 %v439, %v642
        %v649 = vsub.f32 %v444, %v642
        %v650 = vsub.f32 %v449, %v642
        %v651 = vsub.f32 %v454, %v642
        %v652 = vsub.f32 %v459, %v642
        %v653 = vsub.f32 %v464, %v642
        %v654 = vsub.f32 %v469, %v642
        %v655 = vsub.f32 %v474, %v642
        %v656 = vsub.f32 %v479, %v642
        %v657 = vsub.f32 %v484, %v642
        %v658 = vsub.f32 %v489, %v642
        %v659 = vsub.f32 %v494, %v642
        %v660 = vsub.f32 %v499, %v642
        %v661 = vsub.f32 %v504, %v642
        %v662 = vsub.f32 %v509, %v642
        %v663 = vsub.f32 %v514, %v642
        %v664 = vsub.f32 %v519, %v642
        %v665 = vsub.f32 %v524, %v642
        %v666 = vsub.f32 %v529, %v642
        %v667 = vsub.f32 %v534, %v642
        %v668 = vsub.f32 %v539, %v642
        %v669 = vsub.f32 %v544, %v642
        %v670 = vsub.f32 %v549, %v642
        %v671 = vsub.f32 %v554, %v642
        %v672 = vsub.f32 %v559, %v642
        %v673 = vsub.f32 %v564, %v642
        %v674 = vsub.f32 %v569, %v642
        %v675 = vmul.f32 %v643, %v643
        %v676 = vmul.f32 %v644, %v644
        %v677 = vmul.f32 %v645, %v645
        %v678 = vmul.f32 %v646, %v646
        %v679 = vmul.f32 %v647, %v647
        %v680 = vmul.f32 %v648, %v648
        %v681 = vmul.f32 %v649, %v649
        %v682 = vmul.f32 %v650, %v650
        %v683 = vmul.f32 %v651, %v651
        %v684 = vmul.f32 %v652, %v652
        %v685 = vmul.f32 %v653, %v653
        %v686 = vmul.f32 %v654, %v654
        %v687 = vmul.f32 %v655, %v655
        %v688 = vmul.f32 %v656, %v656
        %v689 = vmul.f32 %v657, %v657
        %v690 = vmul.f32 %v658, %v658
        %v691 = vmul.f32 %v659, %v659
        %v692 = vmul.f32 %v660, %v660
        %v693 = vmul.f32 %v661, %v661
        %v694 = vmul.f32 %v662, %v662
        %v695 = vmul.f32 %v663, %v663
        %v696 = vmul.f32 %v664, %v664
        %v697 = vmul.f32 %v665, %v665
        %v698 = vmul.f32 %v666, %v666
        %v699 = vmul.f32 %v667, %v667
        %v700 = vmul.f32 %v668, %v668
        %v701 = vmul.f32 %v669, %v669
        %v702 = vmul.f32 %v670, %v670
        %v703 = vmul.f32 %v671, %v671
        %v704 = vmul.f32 %v672, %v672
        %v705 = vmul.f32 %v673, %v673
        %v706 = vmul.f32 %v674, %v674
        %v707 = vsel %vm572, %v675, 0.0
        %v708 = vsel %vm572, %v676, 0.0
        %v709 = vadd.f32 %v707, %v708
        %v710 = vsel %vm572, %v677, 0.0
        %v711 = vadd.f32 %v709, %v710
        %v712 = vsel %vm572, %v678, 0.0
        %v713 = vadd.f32 %v711, %v712
        %v714 = vsel %vm572, %v679, 0.0
        %v715 = vadd.f32 %v713, %v714
        %v716 = vsel %vm572, %v680, 0.0
        %v717 = vadd.f32 %v715, %v716
        %v718 = vsel %vm572, %v681, 0.0
        %v719 = vadd.f32 %v717, %v718
        %v720 = vsel %vm572, %v682, 0.0
        %v721 = vadd.f32 %v719, %v720
        %v722 = vsel %vm572, %v683, 0.0
        %v723 = vadd.f32 %v721, %v722
        %v724 = vsel %vm572, %v684, 0.0
        %v725 = vadd.f32 %v723, %v724
        %v726 = vsel %vm572, %v685, 0.0
        %v727 = vadd.f32 %v725, %v726
        %v728 = vsel %vm572, %v686, 0.0
        %v729 = vadd.f32 %v727, %v728
        %v730 = vsel %vm572, %v687, 0.0
        %v731 = vadd.f32 %v729, %v730
        %v732 = vsel %vm572, %v688, 0.0
        %v733 = vadd.f32 %v731, %v732
        %v734 = vsel %vm572, %v689, 0.0
        %v735 = vadd.f32 %v733, %v734
        %v736 = vsel %vm572, %v690, 0.0
        %v737 = vadd.f32 %v735, %v736
        %v738 = vsel %vm572, %v691, 0.0
        %v739 = vadd.f32 %v737, %v738
        %v740 = vsel %vm572, %v692, 0.0
        %v741 = vadd.f32 %v739, %v740
        %v742 = vsel %vm572, %v693, 0.0
        %v743 = vadd.f32 %v741, %v742
        %v744 = vsel %vm572, %v694, 0.0
        %v745 = vadd.f32 %v743, %v744
        %v746 = vsel %vm572, %v695, 0.0
        %v747 = vadd.f32 %v745, %v746
        %v748 = vsel %vm572, %v696, 0.0
        %v749 = vadd.f32 %v747, %v748
        %v750 = vsel %vm572, %v697, 0.0
        %v751 = vadd.f32 %v749, %v750
        %v752 = vsel %vm572, %v698, 0.0
        %v753 = vadd.f32 %v751, %v752
        %v754 = vsel %vm572, %v699, 0.0
        %v755 = vadd.f32 %v753, %v754
        %v756 = vsel %vm572, %v700, 0.0
        %v757 = vadd.f32 %v755, %v756
        %v758 = vsel %vm572, %v701, 0.0
        %v759 = vadd.f32 %v757, %v758
        %v760 = vsel %vm572, %v702, 0.0
        %v761 = vadd.f32 %v759, %v760
        %v762 = vsel %vm572, %v703, 0.0
        %v763 = vadd.f32 %v761, %v762
        %v764 = vsel %vm572, %v704, 0.0
        %v765 = vadd.f32 %v763, %v764
        %v766 = vsel %vm572, %v705, 0.0
        %v767 = vadd.f32 %v765, %v766
        %v768 = vsel %vm572, %v706, 0.0
        %v769 = vadd.f32 %v767, %v768
        %v770 = vrot.slane %v769, 4
        %v771 = vadd.f32 %v769, %v770
        %v772 = vrot.slane %v771, 2
        %v773 = vadd.f32 %v771, %v772
        %v774 = vrot.slane %v773, 1
        %v775 = vadd.f32 %v773, %v774
        %vm776 = vcmask 516096
        %777 = vst.msk [vmem:[%s206] sm:$0x1] %vm776, %v641
        %778 = vst.msk [vmem:[%s212] sm:$0x1] %vm776, %v775
        %s779 = sand.u32 %s80, 1
        %s780 = scalar_lea.sflag [#allocation4], %s779
        %s781 = sand.u32 %s80, 1
        %s782 = scalar_lea.vmem [#allocation7], %s781
        %s783 = sand.u32 %s106, 1
        %s784 = scalar_lea.sflag [#allocation9], %s783
        %s785 = sand.u32 %s106, 1
        %s786 = scalar_lea.vmem [#allocation8], %s785
        // Predicated region
        $region37: #{tpu_custom_call.1} parent=27 // pred_check
          %p787 = pneg %p90
        $region38: #{tpu_custom_call.1} parent=27 // pred_check_branch
          %789 = sbr.rel (%p787) target = $region40
        $region39: #{tpu_custom_call.1} parent=27 // pred_region
          %s791 = ssub.s32 16, 16
          %792 = vsyncadd %s780, %s791
          %s793 = smul.addr %s25, 16
          %s794 = scalar_lea.hbm %s2, %s793
          %s796 = sshll.u32 %s782, 4
          %s797 = int_to_ptr.vmem [resolvable:$true] %s796
          %799 = dma.vmem_to_hbm [thread:$0]  %s797, 16, %s794, %s780
        $region40: #{tpu_custom_call.1} parent=27 // pred_fallthru
          _
        // Predicated region
        $region41: #{tpu_custom_call.1} parent=27 // pred_check
          %p800 = pneg %p116
        $region42: #{tpu_custom_call.1} parent=27 // pred_check_branch
          %802 = sbr.rel (%p800) target = $region44
        $region43: #{tpu_custom_call.1} parent=27 // pred_region
          %s804 = ssub.s32 16, 16
          %805 = vsyncadd %s784, %s804
          %s806 = smul.addr %s25, 16
          %s807 = scalar_lea.hbm %s3, %s806
          %s809 = sshll.u32 %s786, 4
          %s810 = int_to_ptr.vmem [resolvable:$true] %s809
          %812 = dma.vmem_to_hbm [thread:$0]  %s810, 16, %s807, %s784
        $region44: #{tpu_custom_call.1} parent=27 // pred_fallthru
          _
      $region28: #{tpu_custom_call.1} parent=5 // pred_fallthru
        _
      %p813 = scmp.le.s32.totalorder 2, %s20
      // Predicated region
      $region45: #{tpu_custom_call.1} parent=5 // pred_check
        %p814 = pneg %p813
      $region46: #{tpu_custom_call.1} parent=5 // pred_check_branch
        %816 = sbr.rel (%p814) target = $region48
      $region47: #{tpu_custom_call.1} parent=5 // pred_region
        %s817 = ssub.s32 %s20, 2
        // Predicated region
        $region49: #{tpu_custom_call.1} parent=47 // pred_check
          %p818 = pneg %p96
        $region50: #{tpu_custom_call.1} parent=47 // pred_check_branch
          %820 = sbr.rel (%p818) target = $region52
        $region51: #{tpu_custom_call.1} parent=47 // pred_region
          %s821 = sand.u32 %s81, 1
          %s822 = scalar_lea.sflag [#allocation4], %s821
          %s823 = sand.u32 %s81, 1
          %s824 = scalar_lea.vmem [#allocation7], %s823
          %825 = dma.done %s822, 16
        $region52: #{tpu_custom_call.1} parent=47 // pred_fallthru
          _
        // Predicated region
        $region53: #{tpu_custom_call.1} parent=47 // pred_check
          %p826 = pneg %p122
        $region54: #{tpu_custom_call.1} parent=47 // pred_check_branch
          %828 = sbr.rel (%p826) target = $region56
        $region55: #{tpu_custom_call.1} parent=47 // pred_region
          %s829 = sand.u32 %s107, 1
          %s830 = scalar_lea.sflag [#allocation9], %s829
          %s831 = sand.u32 %s107, 1
          %s832 = scalar_lea.vmem [#allocation8], %s831
          %833 = dma.done %s830, 16
        $region56: #{tpu_custom_call.1} parent=47 // pred_fallthru
          _
      $region48: #{tpu_custom_call.1} parent=5 // pred_fallthru
        _
    $region6: #{tpu_custom_call.1} parent=1 // loop_footer
      %s24 = sadd.s32 1, %s20
    $region7: #{tpu_custom_call.1} parent=1 // loop_footer_branch
      %19 = sbr.rel target = $region3
    $region8: #{tpu_custom_call.1} parent=1 // loop_exit
      _
    %834 = vsyncpa [#allocation3], 1
    %s835 = scalar_lea.sflag [#allocation3], 1
    %836 = vsyncpa %s835, 1
    %837 = vsyncpa [#allocation6], 1
    %838 = vsyncpa [#allocation4], 1
    %s839 = scalar_lea.sflag [#allocation4], 1
    %840 = vsyncpa %s839, 1
    %841 = vsyncpa [#allocation9], 1
    %s842 = scalar_lea.sflag [#allocation9], 1
    %843 = vsyncpa %s842, 1

</llo_original>
